<compile_context>
chip_gen: v7x
topology: tpu7x:2x2x1
jax: 0.10.0
libtpu: 0.0.40
codegen_flags: <defaults>
</compile_context>

<pallas_src>
import jax
import jax.numpy as jnp
from jax.experimental import pallas as pl
from jax.experimental.pallas import tpu as pltpu


def bigram_kernel(it_ref, idxcol_ref, w_ref, wT_ref, logits_ref, nd_ref):
    tile = idxcol_ref.shape[0]
    V = w_ref.shape[0]

    # ---------- row-major logits (exact gather of w rows) for the output store ----------
    idx_col = idxcol_ref[...]                                       # (tile, 1) int32
    col = jax.lax.broadcasted_iota(jnp.int32, (tile, V), 1)
    onehot = jnp.where(col == idx_col, 1.0, 0.0)                    # (tile, V) f32
    logits_ref[...] = jnp.dot(onehot, w_ref[...],
                              preferred_element_type=jnp.float32,
                              precision=jax.lax.Precision.HIGHEST)  # == w[idx]

    # ---------- lane-dense softmax / NLL:  V on sublanes, N on lanes ----------
    idx = it_ref[0:1, :]                                            # (1, tile) int32
    tgt = it_ref[1:2, :]                                            # (1, tile) int32
    rowv = jax.lax.broadcasted_iota(jnp.int32, (V, tile), 0)        # sublane iota
    onehotT = jnp.where(rowv == idx, 1.0, 0.0)                      # (V, tile) f32
    logitsT = jnp.dot(wT_ref[...], onehotT,
                      preferred_element_type=jnp.float32,
                      precision=jax.lax.Precision.HIGHEST)          # (V, tile) = logits^T

    m = jnp.max(logitsT, axis=0, keepdims=True)                     # (1, tile)
    denom = jnp.sum(jnp.exp(logitsT - m), axis=0, keepdims=True)    # (1, tile)
    picked = jnp.sum(jnp.where(rowv == tgt, logitsT, 0.0),
                     axis=0, keepdims=True)                         # (1, tile)
    valid = (tgt != -1).astype(jnp.float32)                         # (1, tile)

    # log p[n, t_n] = picked - m - log(sum exp(logits - m)); padded/-1 rows masked out.
    logp = picked - m - jnp.log(denom)                              # (1, tile)

    num = -jnp.sum(logp * valid, axis=1, keepdims=True)             # (1, 1)
    den = jnp.sum(valid, axis=1, keepdims=True)                     # (1, 1)

    # Single lane-dense (8,128) partial slab: sublanes 0..3 carry num, 4..7 carry den.
    row8 = jax.lax.broadcasted_iota(jnp.int32, nd_ref.shape, 0)
    nd_ref[...] = jnp.where(row8 < 4,
                            jnp.broadcast_to(num, nd_ref.shape),
                            jnp.broadcast_to(den, nd_ref.shape))


def bigram_naive_forward(w, idx, targets, *, tile_n=2048):
    """w: (V, V) f32; idx, targets: (B, T) int32. Returns (logits (B,T,V), loss scalar)."""
    B, T = idx.shape
    V = w.shape[0]
    N = B * T

    idx_f = idx.reshape(N).astype(jnp.int32)
    tgt_f = targets.reshape(N).astype(jnp.int32)

    # Tile the N axis. tile_n is sized for grid-step-overhead amortization (VMEM is
    # nowhere near a constraint at (tile, 27) f32); keep it a multiple of 128 so the
    # lane-oriented (2, tile) block and the (tile, 27) store stay aligned. Small N
    # runs as a single full block.
    if N <= tile_n:
        tile = N
        n_pad = N
    else:
        tile = tile_n
        n_pad = ((N + tile - 1) // tile) * tile

    pad = n_pad - N
    if pad:
        # Padded rows use a valid index (0) but target -1, so they never touch the loss.
        idx_f = jnp.concatenate([idx_f, jnp.zeros((pad,), jnp.int32)])
        tgt_f = jnp.concatenate([tgt_f, jnp.full((pad,), -1, jnp.int32)])
    nt = n_pad // tile

    it = jnp.stack([idx_f, tgt_f], axis=0)        # (2, n_pad): lane-oriented idx/targets
    idx_col = idx_f.reshape(n_pad, 1)             # (n_pad, 1): sublane-oriented idx copy
    wT = w.T                                      # (V, V): resident transposed weights

    cost = pl.CostEstimate(
        flops=4 * n_pad * V * V,                  # two (.,V)x(V,.) one-hot matmuls
        transcendentals=n_pad * (V + 1),          # exp over V per row + log
        bytes_accessed=(n_pad * V * 4             # logits write
                        + n_pad * 4 * 3           # it + idx_col reads
                        + 2 * V * V * 4           # w, wT (resident)
                        + nt * 8 * 128 * 4),      # num/den partial slabs
    )

    logits_flat, nd_parts = pl.pallas_call(
        bigram_kernel,
        grid=(nt,),
        out_shape=(
            jax.ShapeDtypeStruct((n_pad, V), jnp.float32),
            jax.ShapeDtypeStruct((nt, 8, 128), jnp.float32),
        ),
        in_specs=[
            pl.BlockSpec((2, tile), lambda i: (0, i)),      # merged idx/targets (lane axis = N)
            pl.BlockSpec((tile, 1), lambda i: (i, 0)),      # idx for row-major one-hot
            pl.BlockSpec((V, V), lambda i: (0, 0)),         # w  stays resident
            pl.BlockSpec((V, V), lambda i: (0, 0)),         # wT stays resident
        ],
        out_specs=(
            pl.BlockSpec((tile, V), lambda i: (i, 0)),      # contiguous (tile, V) logits store
            pl.BlockSpec((None, 8, 128), lambda i: (i, 0, 0)),
        ),
        compiler_params=pltpu.CompilerParams(
            dimension_semantics=("parallel",)),             # v7x: shard N-tiles over 2 TCs
        cost_estimate=cost,
    )(it, idx_col, w, wT)

    # Finish the mean-NLL reduction in the wrapper (per-tile partials summed here).
    loss = nd_parts[:, 0, 0].sum() / nd_parts[:, 4, 0].sum()
    logits = logits_flat[:N].reshape(B, T, V)
    return logits, loss


def _reference_forward(w, idx, targets):
    """Pure-JAX reference mirroring the PyTorch module exactly."""
    V = w.shape[0]
    logits = w[idx]                                   # (B, T, V)
    p = jax.nn.softmax(logits, axis=-1).reshape(-1, V)
    t = targets.reshape(-1)
    mask = t != -1
    picked = p[jnp.arange(t.shape[0]), jnp.where(mask, t, 0)]
    loss = -(jnp.log(jnp.where(mask, picked, 1.0)) * mask).sum() / mask.sum()
    return logits, loss


if __name__ == "__main__":
    V = 27          # makemore-style vocab (26 letters + '.')

    key = jax.random.PRNGKey(0)
    kw, ki, kt, ki2, kt2 = jax.random.split(key, 5)

    # nn.Parameter(torch.zeros(V, V)) in __init__; use deterministic non-zero
    # values so softmax / NLL are exercised non-trivially.
    w = 0.1 * jax.random.normal(kw, (V, V), dtype=jnp.float32)

    # ---- case 1: tiny (B=2, T=8), single-block path ----
    B, T = 2, 8
    idx = jax.random.randint(ki, (B, T), 0, V, dtype=jnp.int32)
    targets = jax.random.randint(kt, (B, T), -1, V, dtype=jnp.int32)  # -1 = drop from loss

    logits, loss = bigram_naive_forward(w, idx, targets)
    jax.block_until_ready((logits, loss))

    ref_logits, ref_loss = _reference_forward(w, idx, targets)
    assert logits.shape == (B, T, V)
    assert jnp.allclose(logits, ref_logits, atol=1e-5, rtol=1e-5)
    assert jnp.allclose(loss, ref_loss, atol=1e-5, rtol=1e-5)

    # ---- case 2: gridded + padded path (N not a multiple of the tile) ----
    B2, T2 = 4, 100  # N = 400 -> padded to 512 with tile_n=128, nt=4
    idx2 = jax.random.randint(ki2, (B2, T2), 0, V, dtype=jnp.int32)
    targets2 = jax.random.randint(kt2, (B2, T2), -1, V, dtype=jnp.int32)

    logits2, loss2 = bigram_naive_forward(w, idx2, targets2, tile_n=128)
    jax.block_until_ready((logits2, loss2))

    ref_logits2, ref_loss2 = _reference_forward(w, idx2, targets2)
    assert logits2.shape == (B2, T2, V)
    assert jnp.allclose(logits2, ref_logits2, atol=1e-5, rtol=1e-5)
    assert jnp.allclose(loss2, ref_loss2, atol=1e-5, rtol=1e-5)

    print("KERNEL_OK")
</pallas_src>

<mosaic_0001>
module attributes {stable_mosaic.version = 11 : i64} {
  func.func @bigram_kernel(%arg0: i32, %arg1: memref<2x16xi32, #tpu.memory_space<vmem>>, %arg2: memref<16x1xi32, #tpu.memory_space<vmem>>, %arg3: memref<27x27xf32, #tpu.memory_space<vmem>>, %arg4: memref<27x27xf32, #tpu.memory_space<vmem>>, %arg5: memref<16x27xf32, #tpu.memory_space<vmem>>, %arg6: memref<1x8x128xf32, #tpu.memory_space<vmem>>) attributes {dimension_semantics = [#tpu.dimension_semantics<parallel>], iteration_bounds = array<i64: 1>, scalar_prefetch = 0 : i64, scratch_operands = 0 : i64, tpu.core_type = #tpu.core_type<tc>, window_params = [{transform_indices = @transform_0, window_bounds = array<i64: 2, 16>}, {transform_indices = @transform_1, window_bounds = array<i64: 16, 1>}, {pipeline_mode = #tpu.pipeline_mode<synchronous>, transform_indices = @transform_2, window_bounds = array<i64: 27, 27>}, {pipeline_mode = #tpu.pipeline_mode<synchronous>, transform_indices = @transform_3, window_bounds = array<i64: 27, 27>}, {transform_indices = @transform_4, window_bounds = array<i64: 16, 27>}, {transform_indices = @transform_5, window_bounds = array<i64: 1, 8, 128>}]} {
    %c0 = arith.constant 0 : index
    %c0_0 = arith.constant 0 : index
    %0 = vector.load %arg2[%c0, %c0_0] : memref<16x1xi32, #tpu.memory_space<vmem>>, vector<16x1xi32>
    %1 = tpu.iota {dimensions = array<i32: 1>} : vector<16x27xi32>
    %2 = vector.broadcast %0 : vector<16x1xi32> to vector<16x27xi32>
    %3 = arith.cmpi eq, %1, %2 : vector<16x27xi32>
    %cst = arith.constant 1.000000e+00 : f32
    %cst_1 = arith.constant 0.000000e+00 : f32
    %4 = vector.broadcast %cst : f32 to vector<16x27xf32>
    %5 = vector.broadcast %cst_1 : f32 to vector<16x27xf32>
    %6 = arith.select %3, %4, %5 : vector<16x27xi1>, vector<16x27xf32>
    %c0_2 = arith.constant 0 : index
    %c0_3 = arith.constant 0 : index
    %7 = vector.load %arg3[%c0_2, %c0_3] : memref<27x27xf32, #tpu.memory_space<vmem>>, vector<27x27xf32>
    %cst_4 = arith.constant dense<0.000000e+00> : vector<16x27xf32>
    %8 = tpu.matmul %6, %7, %cst_4 {dimension_numbers = #tpu.dot_dimension_numbers<[1], [0], [0], [1], [0, 0, 1, 1], [], []>, precision = #tpu.contract_precision<fp32>} : vector<16x27xf32>, vector<27x27xf32>, vector<16x27xf32> -> vector<16x27xf32>
    %c0_5 = arith.constant 0 : index
    %c0_6 = arith.constant 0 : index
    %9 = vector.load %arg5[%c0_5, %c0_6] : memref<16x27xf32, #tpu.memory_space<vmem>>, vector<16x27xf32>
    tpu.vector_store %arg5[%c0_5, %c0_6], %8 {strides = array<i32>} : memref<16x27xf32, #tpu.memory_space<vmem>>, vector<16x27xf32>,
    %c0_7 = arith.constant 0 : index
    %c0_8 = arith.constant 0 : index
    %10 = vector.load %arg1[%c0_7, %c0_8] : memref<2x16xi32, #tpu.memory_space<vmem>>, vector<1x16xi32>
    %c1 = arith.constant 1 : index
    %c0_9 = arith.constant 0 : index
    %11 = vector.load %arg1[%c1, %c0_9] : memref<2x16xi32, #tpu.memory_space<vmem>>, vector<1x16xi32>
    %12 = tpu.iota {dimensions = array<i32: 0>} : vector<27x16xi32>
    %13 = vector.broadcast %10 : vector<1x16xi32> to vector<27x16xi32>
    %14 = arith.cmpi eq, %12, %13 : vector<27x16xi32>
    %cst_10 = arith.constant 1.000000e+00 : f32
    %cst_11 = arith.constant 0.000000e+00 : f32
    %15 = vector.broadcast %cst_10 : f32 to vector<27x16xf32>
    %16 = vector.broadcast %cst_11 : f32 to vector<27x16xf32>
    %17 = arith.select %14, %15, %16 : vector<27x16xi1>, vector<27x16xf32>
    %c0_12 = arith.constant 0 : index
    %c0_13 = arith.constant 0 : index
    %18 = vector.load %arg4[%c0_12, %c0_13] : memref<27x27xf32, #tpu.memory_space<vmem>>, vector<27x27xf32>
    %cst_14 = arith.constant dense<0.000000e+00> : vector<27x16xf32>
    %19 = tpu.matmul %18, %17, %cst_14 {dimension_numbers = #tpu.dot_dimension_numbers<[1], [0], [0], [1], [0, 0, 1, 1], [], []>, precision = #tpu.contract_precision<fp32>} : vector<27x27xf32>, vector<27x16xf32>, vector<27x16xf32> -> vector<27x16xf32>
    %cst_15 = arith.constant dense<0xFF800000> : vector<16xf32>
    %20 = vector.multi_reduction <maximumf>, %19, %cst_15 [0] : vector<27x16xf32> to vector<16xf32>
    %21 = vector.shape_cast %20 : vector<16xf32> to vector<1x16xf32>
    %22 = vector.broadcast %21 : vector<1x16xf32> to vector<27x16xf32>
    %23 = arith.subf %19, %22 : vector<27x16xf32>
    %24 = math.exp %23 : vector<27x16xf32>
    %cst_16 = arith.constant dense<0.000000e+00> : vector<16xf32>
    %25 = vector.multi_reduction <add>, %24, %cst_16 [0] : vector<27x16xf32> to vector<16xf32>
    %26 = vector.shape_cast %25 : vector<16xf32> to vector<1x16xf32>
    %27 = vector.broadcast %11 : vector<1x16xi32> to vector<27x16xi32>
    %28 = arith.cmpi eq, %12, %27 : vector<27x16xi32>
    %cst_17 = arith.constant 0.000000e+00 : f32
    %29 = vector.broadcast %cst_17 : f32 to vector<27x16xf32>
    %30 = arith.select %28, %19, %29 : vector<27x16xi1>, vector<27x16xf32>
    %cst_18 = arith.constant dense<0.000000e+00> : vector<16xf32>
    %31 = vector.multi_reduction <add>, %30, %cst_18 [0] : vector<27x16xf32> to vector<16xf32>
    %32 = vector.shape_cast %31 : vector<16xf32> to vector<1x16xf32>
    %c-1_i32 = arith.constant -1 : i32
    %33 = vector.broadcast %c-1_i32 : i32 to vector<1x16xi32>
    %34 = arith.cmpi ne, %11, %33 : vector<1x16xi32>
    %35 = arith.extui %34 : vector<1x16xi1> to vector<1x16xi32>
    %36 = arith.sitofp %35 : vector<1x16xi32> to vector<1x16xf32>
    %37 = arith.subf %32, %21 : vector<1x16xf32>
    %38 = math.log %26 : vector<1x16xf32>
    %39 = arith.subf %37, %38 : vector<1x16xf32>
    %40 = arith.mulf %39, %36 : vector<1x16xf32>
    %cst_19 = arith.constant dense<0.000000e+00> : vector<1xf32>
    %41 = vector.multi_reduction <add>, %40, %cst_19 [1] : vector<1x16xf32> to vector<1xf32>
    %42 = vector.shape_cast %41 : vector<1xf32> to vector<1x1xf32>
    %cst_20 = arith.constant 0.000000e+00 : f32
    %43 = vector.broadcast %cst_20 : f32 to vector<1x1xf32>
    %44 = arith.subf %43, %42 : vector<1x1xf32>
    %cst_21 = arith.constant dense<0.000000e+00> : vector<1xf32>
    %45 = vector.multi_reduction <add>, %36, %cst_21 [1] : vector<1x16xf32> to vector<1xf32>
    %46 = vector.shape_cast %45 : vector<1xf32> to vector<1x1xf32>
    %47 = tpu.iota {dimensions = array<i32: 0>} : vector<8x128xi32>
    %c4_i32 = arith.constant 4 : i32
    %48 = vector.broadcast %c4_i32 : i32 to vector<8x128xi32>
    %49 = arith.cmpi slt, %47, %48 : vector<8x128xi32>
    %50 = vector.shape_cast %44 : vector<1x1xf32> to vector<1x1xf32>
    %51 = vector.broadcast %50 : vector<1x1xf32> to vector<8x128xf32>
    %52 = vector.shape_cast %46 : vector<1x1xf32> to vector<1x1xf32>
    %53 = vector.broadcast %52 : vector<1x1xf32> to vector<8x128xf32>
    %54 = arith.select %49, %51, %53 : vector<8x128xi1>, vector<8x128xf32>
    %c0_22 = arith.constant 0 : index
    %c0_23 = arith.constant 0 : index
    %c0_24 = arith.constant 0 : index
    %55 = vector.load %arg6[%c0_22, %c0_23, %c0_24] : memref<1x8x128xf32, #tpu.memory_space<vmem>>, vector<1x8x128xf32>
    %56 = vector.shape_cast %55 : vector<1x8x128xf32> to vector<8x128xf32>
    %57 = vector.shape_cast %54 : vector<8x128xf32> to vector<1x8x128xf32>
    tpu.vector_store %arg6[%c0_22, %c0_23, %c0_24], %57 {strides = array<i32>} : memref<1x8x128xf32, #tpu.memory_space<vmem>>, vector<1x8x128xf32>,
    return
  }
  func.func @transform_0(%arg0: i32) -> (i32, i32) {
    %c0_i32 = arith.constant 0 : i32
    %c0_i32_0 = arith.constant 0 : i32
    return %c0_i32, %arg0 : i32, i32
  }
  func.func @transform_1(%arg0: i32) -> (i32, i32) {
    %c0_i32 = arith.constant 0 : i32
    %c0_i32_0 = arith.constant 0 : i32
    return %arg0, %c0_i32 : i32, i32
  }
  func.func @transform_2(%arg0: i32) -> (i32, i32) {
    %c0_i32 = arith.constant 0 : i32
    %c0_i32_0 = arith.constant 0 : i32
    %c0_i32_1 = arith.constant 0 : i32
    return %c0_i32, %c0_i32_0 : i32, i32
  }
  func.func @transform_3(%arg0: i32) -> (i32, i32) {
    %c0_i32 = arith.constant 0 : i32
    %c0_i32_0 = arith.constant 0 : i32
    %c0_i32_1 = arith.constant 0 : i32
    return %c0_i32, %c0_i32_0 : i32, i32
  }
  func.func @transform_4(%arg0: i32) -> (i32, i32) {
    %c0_i32 = arith.constant 0 : i32
    %c0_i32_0 = arith.constant 0 : i32
    return %arg0, %c0_i32 : i32, i32
  }
  func.func @transform_5(%arg0: i32) -> (i32, i32, i32) {
    %c0_i32 = arith.constant 0 : i32
    %c0_i32_0 = arith.constant 0 : i32
    %c0_i32_1 = arith.constant 0 : i32
    return %arg0, %c0_i32, %c0_i32_0 : i32, i32, i32
  }
}

</mosaic_0001>

<llo_original>
// kernel: tpu_custom_call.1
$region0: #{tpu_custom_call.1}
  #allocation0 [shape = 'u32[]', space=smem, size = 0x4, offset = 0x4, fixed_abs, tag = 'smem constant byte address 0x4 - core index']
  #allocation1 [shape = 'u32[144,128]{1,0:T(1,128)}', space=vmem, size = 0x12000, scoped, tag = 'internal scratch']
  %s0 = inlined_call_operand.vmem [shape: s32[2,16], index: 0, kind: input, shape index: {}]
  %s1 = inlined_call_operand.vmem [shape: s32[16,1], index: 1, kind: input, shape index: {}]
  %s2 = inlined_call_operand.hbm [shape: f32[27,27], index: 2, kind: input, shape index: {}]
  %s3 = inlined_call_operand.hbm [shape: f32[27,27], index: 3, kind: input, shape index: {}]
  %s4 = inlined_call_operand.hbm [shape: f32[16,27], index: 4, kind: output, shape index: {0}]
  %s5 = inlined_call_operand.hbm [shape: f32[1,8,128], index: 5, kind: output, shape index: {1}]
  %6 = xla_tuple %s4, %s5
  %s7 = sld [smem:[#allocation0]]
  $region42: #{tpu_custom_call.1} parent=0
    _
  %s9 = ssub.s32 1, %s7
  %s10 = scalar_select 0, %s9, %s7
  $region1: #{tpu_custom_call.1} parent=0
    #allocation2 [shape = 'u8[16384]{0}', space=vmem, size = 0x4000, scoped, tag = 'input window, operand 2, single buffered']
    #allocation3 [shape = 's32[1]{0}', space=sflag, size = 0x4, scoped, tag = 'scoped memory for tpu_custom_call.1']
    #allocation4 [shape = 's32[1]{0}', space=sflag, size = 0x4, scoped, tag = 'scoped memory for tpu_custom_call.1']
    #allocation5 [shape = 'u8[16384]{0}', space=vmem, size = 0x4000, scoped, tag = 'input window, operand 3, single buffered']
    #allocation6 [shape = 's32[1]{0}', space=sflag, size = 0x4, scoped, tag = 'scoped memory for tpu_custom_call.1']
    #allocation7 [shape = 'u8[8192]{0}', space=vmem, size = 0x2000, scoped, tag = 'output window, operand 0, single buffered']
    #allocation8 [shape = 'u8[4096]{0}', space=vmem, size = 0x1000, scoped, tag = 'output window, operand 1, single buffered']
    #allocation9 [shape = 's32[1]{0}', space=sflag, size = 0x4, scoped, tag = 'scoped memory for tpu_custom_call.1']
    %11 = vsyncpa [#allocation3], 0
    %12 = vsyncpa [#allocation6], 0
    %13 = vsyncpa [#allocation4], 0
    %14 = vsyncpa [#allocation9], 0
    // Predicated region
    $region2: #{tpu_custom_call.1} parent=1 // pred_check
      _
    $region3: #{tpu_custom_call.1} parent=1 // pred_check_branch
      %16 = sbr.rel (0) target = $region5
    $region4: #{tpu_custom_call.1} parent=1 // pred_region
      _
    $region5: #{tpu_custom_call.1} parent=1 // pred_fallthru
      _
    // Predicated region
    $region6: #{tpu_custom_call.1} parent=1 // pred_check
      _
    $region7: #{tpu_custom_call.1} parent=1 // pred_check_branch
      %18 = sbr.rel (0) target = $region9
    $region8: #{tpu_custom_call.1} parent=1 // pred_region
      _
    $region9: #{tpu_custom_call.1} parent=1 // pred_fallthru
      _
    // Predicated region
    $region10: #{tpu_custom_call.1} parent=1 // pred_check
      _
    $region11: #{tpu_custom_call.1} parent=1 // pred_check_branch
      %20 = sbr.rel (0) target = $region13
    $region12: #{tpu_custom_call.1} parent=1 // pred_region
      %s22 = ssub.s32 512, 512
      %23 = vsyncadd [#allocation3], %s22
      %s24 = sshll.u32 [#allocation2], 4
      %s25 = int_to_ptr.vmem [resolvable:$true] %s24
      %30 = dma.hbm_to_vmem [thread:$0]  %s2, 512, %s25, [#allocation3], 128, 128, 8
    $region13: #{tpu_custom_call.1} parent=1 // pred_fallthru
      _
    // Predicated region
    $region14: #{tpu_custom_call.1} parent=1 // pred_check
      _
    $region15: #{tpu_custom_call.1} parent=1 // pred_check_branch
      %32 = sbr.rel (0) target = $region17
    $region16: #{tpu_custom_call.1} parent=1 // pred_region
      %s34 = ssub.s32 512, 512
      %35 = vsyncadd [#allocation6], %s34
      %s36 = sshll.u32 [#allocation5], 4
      %s37 = int_to_ptr.vmem [resolvable:$true] %s36
      %42 = dma.hbm_to_vmem [thread:$0]  %s3, 512, %s37, [#allocation6], 128, 128, 8
    $region17: #{tpu_custom_call.1} parent=1 // pred_fallthru
      _
    // Predicated region
    $region18: #{tpu_custom_call.1} parent=1 // pred_check
      _
    $region19: #{tpu_custom_call.1} parent=1 // pred_check_branch
      %44 = sbr.rel (0) target = $region21
    $region20: #{tpu_custom_call.1} parent=1 // pred_region
      %45 = dma.done [#allocation3], 512
    $region21: #{tpu_custom_call.1} parent=1 // pred_fallthru
      _
    // Predicated region
    $region22: #{tpu_custom_call.1} parent=1 // pred_check
      _
    $region23: #{tpu_custom_call.1} parent=1 // pred_check_branch
      %47 = sbr.rel (0) target = $region25
    $region24: #{tpu_custom_call.1} parent=1 // pred_region
      %48 = dma.done [#allocation6], 512
    $region25: #{tpu_custom_call.1} parent=1 // pred_fallthru
      _
    %v49 = vld [vmem:[%s1] sm:$0xff]
    %v50 = vld [vmem:[%s1 + $0x8] sm:$0xff]
    %v51 = vlaneseq
    %v52 = vand.u32 %v51, 127
    %53 = vset.pattern.permute.xlu0 0
    %54 = vperm.xlu0 %53, %v49
    %v55 = vpop.permute.xlu0 %54
    %56 = vset.pattern.permute.xlu0 0
    %57 = vperm.xlu0 %56, %v50
    %v58 = vpop.permute.xlu0 %57
    %vm59 = vcmp.eq.s32.totalorder %v52, %v55
    %vm60 = vcmp.eq.s32.totalorder %v52, %v58
    %v61 = vsel %vm59, 1.0, 0.0
    %v62 = vsel %vm60, 1.0, 0.0
    %v63 = vld [vmem:[#allocation2] sm:$0xff]
    %v64 = vld [vmem:[#allocation2 + $0x8] sm:$0xff]
    %v65 = vld [vmem:[#allocation2 + $0x10] sm:$0xff]
    %v66 = vld [vmem:[#allocation2 + $0x18] sm:$0x7]
    %vm67 = vcmask 220160
    %v69 = vsel %vm67, %v61, 0
    %v72 = vsel %vm67, %v62, 0
    %vm74 = vcmask 1042432
    %v76 = vsel %vm74, %v66, 0
    %78 = vmatprep.subr.mxu0 0.0
    %v79 = vand.u32 %v63, 4294901760
    %80 = vmatpush1.msra.mxu0 %v79
    %81 = vmatprep.subr.mxu0 0.0
    %v82 = vand.u32 %v64, 4294901760
    %83 = vmatpush1.msra.mxu0 %v82
    %84 = vmatprep.subr.mxu0 0.0
    %v85 = vand.u32 %v65, 4294901760
    %86 = vmatpush1.msra.mxu0 %v85
    %87 = vmatprep.subr.mxu0 0.0
    %v88 = vand.u32 %v76, 4294901760
    %89 = vmatpush1.msra.mxu0 %v88
    %90 = vmatprep.subr.mxu0 0.0
    %91 = vmatpush1.msra.mxu0 0.0
    %92 = vmatprep.subr.mxu0 0.0
    %93 = vmatpush1.msra.mxu0 0.0
    %94 = vmatprep.subr.mxu0 0.0
    %95 = vmatpush1.msra.mxu0 0.0
    %96 = vmatprep.subr.mxu0 0.0
    %97 = vmatpush1.msra.mxu0 0.0
    %98 = vmatprep.subr.mxu0 0.0
    %99 = vmatpush1.msra.mxu0 0.0
    %100 = vmatprep.subr.mxu0 0.0
    %101 = vmatpush1.msra.mxu0 0.0
    %102 = vmatprep.subr.mxu0 0.0
    %103 = vmatpush1.msra.mxu0 0.0
    %104 = vmatprep.subr.mxu0 0.0
    %105 = vmatpush1.msra.mxu0 0.0
    %106 = vmatprep.subr.mxu0 0.0
    %107 = vmatpush1.msra.mxu0 0.0
    %108 = vmatprep.subr.mxu0 0.0
    %109 = vmatpush1.msra.mxu0 0.0
    %110 = vmatprep.subr.mxu0 0.0
    %111 = vmatpush1.msra.mxu0 0.0
    %112 = vmatprep.subr.mxu0 0.0
    %113 = vmatpush1.msra.mxu0 0.0
    %114 = vmatprep.subr.mxu0 0.0
    %115 = vmatpush1.msra.mxu0 0.0
    %116 = vmatprep.subr.mxu0 0.0
    %117 = vmatpush1.msra.mxu0 0.0
    %118 = vmatprep.subr.mxu0 0.0
    %119 = vmatpush1.msra.mxu0 0.0
    %120 = vmatprep.subr.mxu0 0.0
    %121 = vmatpush1.msra.mxu0 0.0
    %122 = vmatprep.subr.mxu0 0.0
    %123 = vmatpush1.msra.mxu0 0.0
    %124 = vmatprep.subr.mxu0 0.0
    %125 = vmatpush1.msra.mxu0 0.0
    %126 = vmatprep.subr.mxu0 0.0
    %127 = vmatpush1.msra.mxu0 0.0
    %128 = vmatprep.subr.mxu0 0.0
    %129 = vmatpush1.msra.mxu0 0.0
    %130 = vmatprep.subr.mxu0 0.0
    %131 = vmatpush1.msra.mxu0 0.0
    %132 = vmatprep.subr.mxu0 0.0
    %133 = vmatpush1.msra.mxu0 0.0
    %134 = vmatprep.subr.mxu0 0.0
    %135 = vmatpush1.msra.mxu0 0.0
    %136 = vmatprep.subr.mxu0 0.0
    %137 = vmatpush1.msra.mxu0 0.0
    %138 = vmatprep.subr.mxu0 0.0
    %139 = vmatpush1.msra.mxu0 0.0
    %140 = vmatprep.subr.mxu0 0.0
    %141 = vmatpush1.msra.mxu0 0.0
    %142 = vmatprep.subr.mxu0 0.0
    %143 = vmatpush1.msra.mxu0 0.0
    %144 = vmatprep.subr.mxu0 0.0
    %145 = vmatpush1.msra.mxu0 0.0
    %146 = vmatprep.mubr.f32.mxu0 0.0
    %v147 = vand.u32 %v69, 4294901760
    %v148 = vsub.f32 %v69, %v147
    %v149 = vand.u32 %v148, 4294901760
    %v150 = vsub.f32 %v148, %v149
    %v151 = vand.u32 %v150, 4294901760
    %152 = vmatmul.mubr.f32.gmra.mrb[0].mxu0 %v151
    %v153 = vpop.f32.mrb[0].mxu0
    %v154 = vadd.f32 0.0, %v153
    %v155 = vpop.f32.mrb[0].mxu0
    %156 = vmatprep.mubr.f32.mxu0 0.0
    %v157 = vand.u32 %v72, 4294901760
    %v158 = vsub.f32 %v72, %v157
    %v159 = vand.u32 %v158, 4294901760
    %v160 = vsub.f32 %v158, %v159
    %v161 = vand.u32 %v160, 4294901760
    %162 = vmatmul.mubr.f32.gmra.mrb[0].mxu0 %v161
    %v163 = vpop.f32.mrb[0].mxu0
    %v164 = vadd.f32 0.0, %v163
    %v165 = vpop.f32.mrb[0].mxu0
    %166 = vdwg.mxu0
    %167 = vmatprep.subr.mxu0 0.0
    %v168 = vand.u32 %v63, 4294901760
    %v169 = vsub.f32 %v63, %v168
    %v170 = vand.u32 %v169, 4294901760
    %v171 = vsub.f32 %v169, %v170
    %v172 = vand.u32 %v171, 4294901760
    %173 = vmatpush1.msra.mxu0 %v172
    %174 = vmatprep.subr.mxu0 0.0
    %v175 = vand.u32 %v64, 4294901760
    %v176 = vsub.f32 %v64, %v175
    %v177 = vand.u32 %v176, 4294901760
    %v178 = vsub.f32 %v176, %v177
    %v179 = vand.u32 %v178, 4294901760
    %180 = vmatpush1.msra.mxu0 %v179
    %181 = vmatprep.subr.mxu0 0.0
    %v182 = vand.u32 %v65, 4294901760
    %v183 = vsub.f32 %v65, %v182
    %v184 = vand.u32 %v183, 4294901760
    %v185 = vsub.f32 %v183, %v184
    %v186 = vand.u32 %v185, 4294901760
    %187 = vmatpush1.msra.mxu0 %v186
    %188 = vmatprep.subr.mxu0 0.0
    %v189 = vand.u32 %v76, 4294901760
    %v190 = vsub.f32 %v76, %v189
    %v191 = vand.u32 %v190, 4294901760
    %v192 = vsub.f32 %v190, %v191
    %v193 = vand.u32 %v192, 4294901760
    %194 = vmatpush1.msra.mxu0 %v193
    %195 = vmatprep.subr.mxu0 0.0
    %196 = vmatpush1.msra.mxu0 0.0
    %197 = vmatprep.subr.mxu0 0.0
    %198 = vmatpush1.msra.mxu0 0.0
    %199 = vmatprep.subr.mxu0 0.0
    %200 = vmatpush1.msra.mxu0 0.0
    %201 = vmatprep.subr.mxu0 0.0
    %202 = vmatpush1.msra.mxu0 0.0
    %203 = vmatprep.subr.mxu0 0.0
    %204 = vmatpush1.msra.mxu0 0.0
    %205 = vmatprep.subr.mxu0 0.0
    %206 = vmatpush1.msra.mxu0 0.0
    %207 = vmatprep.subr.mxu0 0.0
    %208 = vmatpush1.msra.mxu0 0.0
    %209 = vmatprep.subr.mxu0 0.0
    %210 = vmatpush1.msra.mxu0 0.0
    %211 = vmatprep.subr.mxu0 0.0
    %212 = vmatpush1.msra.mxu0 0.0
    %213 = vmatprep.subr.mxu0 0.0
    %214 = vmatpush1.msra.mxu0 0.0
    %215 = vmatprep.subr.mxu0 0.0
    %216 = vmatpush1.msra.mxu0 0.0
    %217 = vmatprep.subr.mxu0 0.0
    %218 = vmatpush1.msra.mxu0 0.0
    %219 = vmatprep.subr.mxu0 0.0
    %220 = vmatpush1.msra.mxu0 0.0
    %221 = vmatprep.subr.mxu0 0.0
    %222 = vmatpush1.msra.mxu0 0.0
    %223 = vmatprep.subr.mxu0 0.0
    %224 = vmatpush1.msra.mxu0 0.0
    %225 = vmatprep.subr.mxu0 0.0
    %226 = vmatpush1.msra.mxu0 0.0
    %227 = vmatprep.subr.mxu0 0.0
    %228 = vmatpush1.msra.mxu0 0.0
    %229 = vmatprep.subr.mxu0 0.0
    %230 = vmatpush1.msra.mxu0 0.0
    %231 = vmatprep.subr.mxu0 0.0
    %232 = vmatpush1.msra.mxu0 0.0
    %233 = vmatprep.subr.mxu0 0.0
    %234 = vmatpush1.msra.mxu0 0.0
    %235 = vmatprep.subr.mxu0 0.0
    %236 = vmatpush1.msra.mxu0 0.0
    %237 = vmatprep.subr.mxu0 0.0
    %238 = vmatpush1.msra.mxu0 0.0
    %239 = vmatprep.subr.mxu0 0.0
    %240 = vmatpush1.msra.mxu0 0.0
    %241 = vmatprep.subr.mxu0 0.0
    %242 = vmatpush1.msra.mxu0 0.0
    %243 = vmatprep.subr.mxu0 0.0
    %244 = vmatpush1.msra.mxu0 0.0
    %245 = vmatprep.subr.mxu0 0.0
    %246 = vmatpush1.msra.mxu0 0.0
    %247 = vmatprep.subr.mxu0 0.0
    %248 = vmatpush1.msra.mxu0 0.0
    %249 = vmatprep.subr.mxu0 0.0
    %250 = vmatpush1.msra.mxu0 0.0
    %251 = vmatprep.mubr.f32.mxu0 0.0
    %v252 = vand.u32 %v69, 4294901760
    %253 = vmatmul.mubr.f32.gmra.mrb[0].mxu0 %v252
    %v254 = vpop.f32.mrb[0].mxu0
    %v255 = vadd.f32 %v154, %v254
    %v256 = vpop.f32.mrb[0].mxu0
    %257 = vmatprep.mubr.f32.mxu0 0.0
    %v258 = vand.u32 %v72, 4294901760
    %259 = vmatmul.mubr.f32.gmra.mrb[0].mxu0 %v258
    %v260 = vpop.f32.mrb[0].mxu0
    %v261 = vadd.f32 %v164, %v260
    %v262 = vpop.f32.mrb[0].mxu0
    %263 = vdwg.mxu0
    %264 = vmatprep.subr.mxu0 0.0
    %v265 = vand.u32 %v63, 4294901760
    %v266 = vsub.f32 %v63, %v265
    %267 = vmatpush1.msra.mxu0 %v266
    %268 = vmatprep.subr.mxu0 0.0
    %v269 = vand.u32 %v64, 4294901760
    %v270 = vsub.f32 %v64, %v269
    %271 = vmatpush1.msra.mxu0 %v270
    %272 = vmatprep.subr.mxu0 0.0
    %v273 = vand.u32 %v65, 4294901760
    %v274 = vsub.f32 %v65, %v273
    %275 = vmatpush1.msra.mxu0 %v274
    %276 = vmatprep.subr.mxu0 0.0
    %v277 = vand.u32 %v76, 4294901760
    %v278 = vsub.f32 %v76, %v277
    %279 = vmatpush1.msra.mxu0 %v278
    %280 = vmatprep.subr.mxu0 0.0
    %281 = vmatpush1.msra.mxu0 0.0
    %282 = vmatprep.subr.mxu0 0.0
    %283 = vmatpush1.msra.mxu0 0.0
    %284 = vmatprep.subr.mxu0 0.0
    %285 = vmatpush1.msra.mxu0 0.0
    %286 = vmatprep.subr.mxu0 0.0
    %287 = vmatpush1.msra.mxu0 0.0
    %288 = vmatprep.subr.mxu0 0.0
    %289 = vmatpush1.msra.mxu0 0.0
    %290 = vmatprep.subr.mxu0 0.0
    %291 = vmatpush1.msra.mxu0 0.0
    %292 = vmatprep.subr.mxu0 0.0
    %293 = vmatpush1.msra.mxu0 0.0
    %294 = vmatprep.subr.mxu0 0.0
    %295 = vmatpush1.msra.mxu0 0.0
    %296 = vmatprep.subr.mxu0 0.0
    %297 = vmatpush1.msra.mxu0 0.0
    %298 = vmatprep.subr.mxu0 0.0
    %299 = vmatpush1.msra.mxu0 0.0
    %300 = vmatprep.subr.mxu0 0.0
    %301 = vmatpush1.msra.mxu0 0.0
    %302 = vmatprep.subr.mxu0 0.0
    %303 = vmatpush1.msra.mxu0 0.0
    %304 = vmatprep.subr.mxu0 0.0
    %305 = vmatpush1.msra.mxu0 0.0
    %306 = vmatprep.subr.mxu0 0.0
    %307 = vmatpush1.msra.mxu0 0.0
    %308 = vmatprep.subr.mxu0 0.0
    %309 = vmatpush1.msra.mxu0 0.0
    %310 = vmatprep.subr.mxu0 0.0
    %311 = vmatpush1.msra.mxu0 0.0
    %312 = vmatprep.subr.mxu0 0.0
    %313 = vmatpush1.msra.mxu0 0.0
    %314 = vmatprep.subr.mxu0 0.0
    %315 = vmatpush1.msra.mxu0 0.0
    %316 = vmatprep.subr.mxu0 0.0
    %317 = vmatpush1.msra.mxu0 0.0
    %318 = vmatprep.subr.mxu0 0.0
    %319 = vmatpush1.msra.mxu0 0.0
    %320 = vmatprep.subr.mxu0 0.0
    %321 = vmatpush1.msra.mxu0 0.0
    %322 = vmatprep.subr.mxu0 0.0
    %323 = vmatpush1.msra.mxu0 0.0
    %324 = vmatprep.subr.mxu0 0.0
    %325 = vmatpush1.msra.mxu0 0.0
    %326 = vmatprep.subr.mxu0 0.0
    %327 = vmatpush1.msra.mxu0 0.0
    %328 = vmatprep.subr.mxu0 0.0
    %329 = vmatpush1.msra.mxu0 0.0
    %330 = vmatprep.subr.mxu0 0.0
    %331 = vmatpush1.msra.mxu0 0.0
    %332 = vmatprep.subr.mxu0 0.0
    %333 = vmatpush1.msra.mxu0 0.0
    %334 = vmatprep.subr.mxu0 0.0
    %335 = vmatpush1.msra.mxu0 0.0
    %336 = vmatprep.mubr.f32.mxu0 0.0
    %v337 = vand.u32 %v69, 4294901760
    %v338 = vsub.f32 %v69, %v337
    %339 = vmatmul.mubr.f32.gmra.mrb[0].mxu0 %v338
    %v340 = vpop.f32.mrb[0].mxu0
    %v341 = vadd.f32 %v255, %v340
    %v342 = vpop.f32.mrb[0].mxu0
    %343 = vmatprep.mubr.f32.mxu0 0.0
    %v344 = vand.u32 %v72, 4294901760
    %v345 = vsub.f32 %v72, %v344
    %346 = vmatmul.mubr.f32.gmra.mrb[0].mxu0 %v345
    %v347 = vpop.f32.mrb[0].mxu0
    %v348 = vadd.f32 %v261, %v347
    %v349 = vpop.f32.mrb[0].mxu0
    %350 = vdwg.mxu0
    %351 = vmatprep.subr.mxu0 0.0
    %v352 = vand.u32 %v63, 4294901760
    %353 = vmatpush1.msra.mxu0 %v352
    %354 = vmatprep.subr.mxu0 0.0
    %v355 = vand.u32 %v64, 4294901760
    %356 = vmatpush1.msra.mxu0 %v355
    %357 = vmatprep.subr.mxu0 0.0
    %v358 = vand.u32 %v65, 4294901760
    %359 = vmatpush1.msra.mxu0 %v358
    %360 = vmatprep.subr.mxu0 0.0
    %v361 = vand.u32 %v76, 4294901760
    %362 = vmatpush1.msra.mxu0 %v361
    %363 = vmatprep.subr.mxu0 0.0
    %364 = vmatpush1.msra.mxu0 0.0
    %365 = vmatprep.subr.mxu0 0.0
    %366 = vmatpush1.msra.mxu0 0.0
    %367 = vmatprep.subr.mxu0 0.0
    %368 = vmatpush1.msra.mxu0 0.0
    %369 = vmatprep.subr.mxu0 0.0
    %370 = vmatpush1.msra.mxu0 0.0
    %371 = vmatprep.subr.mxu0 0.0
    %372 = vmatpush1.msra.mxu0 0.0
    %373 = vmatprep.subr.mxu0 0.0
    %374 = vmatpush1.msra.mxu0 0.0
    %375 = vmatprep.subr.mxu0 0.0
    %376 = vmatpush1.msra.mxu0 0.0
    %377 = vmatprep.subr.mxu0 0.0
    %378 = vmatpush1.msra.mxu0 0.0
    %379 = vmatprep.subr.mxu0 0.0
    %380 = vmatpush1.msra.mxu0 0.0
    %381 = vmatprep.subr.mxu0 0.0
    %382 = vmatpush1.msra.mxu0 0.0
    %383 = vmatprep.subr.mxu0 0.0
    %384 = vmatpush1.msra.mxu0 0.0
    %385 = vmatprep.subr.mxu0 0.0
    %386 = vmatpush1.msra.mxu0 0.0
    %387 = vmatprep.subr.mxu0 0.0
    %388 = vmatpush1.msra.mxu0 0.0
    %389 = vmatprep.subr.mxu0 0.0
    %390 = vmatpush1.msra.mxu0 0.0
    %391 = vmatprep.subr.mxu0 0.0
    %392 = vmatpush1.msra.mxu0 0.0
    %393 = vmatprep.subr.mxu0 0.0
    %394 = vmatpush1.msra.mxu0 0.0
    %395 = vmatprep.subr.mxu0 0.0
    %396 = vmatpush1.msra.mxu0 0.0
    %397 = vmatprep.subr.mxu0 0.0
    %398 = vmatpush1.msra.mxu0 0.0
    %399 = vmatprep.subr.mxu0 0.0
    %400 = vmatpush1.msra.mxu0 0.0
    %401 = vmatprep.subr.mxu0 0.0
    %402 = vmatpush1.msra.mxu0 0.0
    %403 = vmatprep.subr.mxu0 0.0
    %404 = vmatpush1.msra.mxu0 0.0
    %405 = vmatprep.subr.mxu0 0.0
    %406 = vmatpush1.msra.mxu0 0.0
    %407 = vmatprep.subr.mxu0 0.0
    %408 = vmatpush1.msra.mxu0 0.0
    %409 = vmatprep.subr.mxu0 0.0
    %410 = vmatpush1.msra.mxu0 0.0
    %411 = vmatprep.subr.mxu0 0.0
    %412 = vmatpush1.msra.mxu0 0.0
    %413 = vmatprep.subr.mxu0 0.0
    %414 = vmatpush1.msra.mxu0 0.0
    %415 = vmatprep.subr.mxu0 0.0
    %416 = vmatpush1.msra.mxu0 0.0
    %417 = vmatprep.subr.mxu0 0.0
    %418 = vmatpush1.msra.mxu0 0.0
    %419 = vmatprep.mubr.f32.mxu0 0.0
    %v420 = vand.u32 %v69, 4294901760
    %v421 = vsub.f32 %v69, %v420
    %v422 = vand.u32 %v421, 4294901760
    %423 = vmatmul.mubr.f32.gmra.mrb[0].mxu0 %v422
    %v424 = vpop.f32.mrb[0].mxu0
    %v425 = vadd.f32 %v341, %v424
    %v426 = vpop.f32.mrb[0].mxu0
    %427 = vmatprep.mubr.f32.mxu0 0.0
    %v428 = vand.u32 %v72, 4294901760
    %v429 = vsub.f32 %v72, %v428
    %v430 = vand.u32 %v429, 4294901760
    %431 = vmatmul.mubr.f32.gmra.mrb[0].mxu0 %v430
    %v432 = vpop.f32.mrb[0].mxu0
    %v433 = vadd.f32 %v348, %v432
    %v434 = vpop.f32.mrb[0].mxu0
    %435 = vdwg.mxu0
    %436 = vmatprep.subr.mxu0 0.0
    %v437 = vand.u32 %v63, 4294901760
    %v438 = vsub.f32 %v63, %v437
    %v439 = vand.u32 %v438, 4294901760
    %440 = vmatpush1.msra.mxu0 %v439
    %441 = vmatprep.subr.mxu0 0.0
    %v442 = vand.u32 %v64, 4294901760
    %v443 = vsub.f32 %v64, %v442
    %v444 = vand.u32 %v443, 4294901760
    %445 = vmatpush1.msra.mxu0 %v444
    %446 = vmatprep.subr.mxu0 0.0
    %v447 = vand.u32 %v65, 4294901760
    %v448 = vsub.f32 %v65, %v447
    %v449 = vand.u32 %v448, 4294901760
    %450 = vmatpush1.msra.mxu0 %v449
    %451 = vmatprep.subr.mxu0 0.0
    %v452 = vand.u32 %v76, 4294901760
    %v453 = vsub.f32 %v76, %v452
    %v454 = vand.u32 %v453, 4294901760
    %455 = vmatpush1.msra.mxu0 %v454
    %456 = vmatprep.subr.mxu0 0.0
    %457 = vmatpush1.msra.mxu0 0.0
    %458 = vmatprep.subr.mxu0 0.0
    %459 = vmatpush1.msra.mxu0 0.0
    %460 = vmatprep.subr.mxu0 0.0
    %461 = vmatpush1.msra.mxu0 0.0
    %462 = vmatprep.subr.mxu0 0.0
    %463 = vmatpush1.msra.mxu0 0.0
    %464 = vmatprep.subr.mxu0 0.0
    %465 = vmatpush1.msra.mxu0 0.0
    %466 = vmatprep.subr.mxu0 0.0
    %467 = vmatpush1.msra.mxu0 0.0
    %468 = vmatprep.subr.mxu0 0.0
    %469 = vmatpush1.msra.mxu0 0.0
    %470 = vmatprep.subr.mxu0 0.0
    %471 = vmatpush1.msra.mxu0 0.0
    %472 = vmatprep.subr.mxu0 0.0
    %473 = vmatpush1.msra.mxu0 0.0
    %474 = vmatprep.subr.mxu0 0.0
    %475 = vmatpush1.msra.mxu0 0.0
    %476 = vmatprep.subr.mxu0 0.0
    %477 = vmatpush1.msra.mxu0 0.0
    %478 = vmatprep.subr.mxu0 0.0
    %479 = vmatpush1.msra.mxu0 0.0
    %480 = vmatprep.subr.mxu0 0.0
    %481 = vmatpush1.msra.mxu0 0.0
    %482 = vmatprep.subr.mxu0 0.0
    %483 = vmatpush1.msra.mxu0 0.0
    %484 = vmatprep.subr.mxu0 0.0
    %485 = vmatpush1.msra.mxu0 0.0
    %486 = vmatprep.subr.mxu0 0.0
    %487 = vmatpush1.msra.mxu0 0.0
    %488 = vmatprep.subr.mxu0 0.0
    %489 = vmatpush1.msra.mxu0 0.0
    %490 = vmatprep.subr.mxu0 0.0
    %491 = vmatpush1.msra.mxu0 0.0
    %492 = vmatprep.subr.mxu0 0.0
    %493 = vmatpush1.msra.mxu0 0.0
    %494 = vmatprep.subr.mxu0 0.0
    %495 = vmatpush1.msra.mxu0 0.0
    %496 = vmatprep.subr.mxu0 0.0
    %497 = vmatpush1.msra.mxu0 0.0
    %498 = vmatprep.subr.mxu0 0.0
    %499 = vmatpush1.msra.mxu0 0.0
    %500 = vmatprep.subr.mxu0 0.0
    %501 = vmatpush1.msra.mxu0 0.0
    %502 = vmatprep.subr.mxu0 0.0
    %503 = vmatpush1.msra.mxu0 0.0
    %504 = vmatprep.subr.mxu0 0.0
    %505 = vmatpush1.msra.mxu0 0.0
    %506 = vmatprep.subr.mxu0 0.0
    %507 = vmatpush1.msra.mxu0 0.0
    %508 = vmatprep.subr.mxu0 0.0
    %509 = vmatpush1.msra.mxu0 0.0
    %510 = vmatprep.subr.mxu0 0.0
    %511 = vmatpush1.msra.mxu0 0.0
    %512 = vmatprep.mubr.f32.mxu0 0.0
    %v513 = vand.u32 %v69, 4294901760
    %514 = vmatmul.mubr.f32.gmra.mrb[0].mxu0 %v513
    %v515 = vpop.f32.mrb[0].mxu0
    %v516 = vadd.f32 %v425, %v515
    %v517 = vpop.f32.mrb[0].mxu0
    %518 = vmatprep.mubr.f32.mxu0 0.0
    %v519 = vand.u32 %v72, 4294901760
    %520 = vmatmul.mubr.f32.gmra.mrb[0].mxu0 %v519
    %v521 = vpop.f32.mrb[0].mxu0
    %v522 = vadd.f32 %v433, %v521
    %v523 = vpop.f32.mrb[0].mxu0
    %524 = vdwg.mxu0
    %525 = vmatprep.subr.mxu0 0.0
    %v526 = vand.u32 %v63, 4294901760
    %527 = vmatpush1.msra.mxu0 %v526
    %528 = vmatprep.subr.mxu0 0.0
    %v529 = vand.u32 %v64, 4294901760
    %530 = vmatpush1.msra.mxu0 %v529
    %531 = vmatprep.subr.mxu0 0.0
    %v532 = vand.u32 %v65, 4294901760
    %533 = vmatpush1.msra.mxu0 %v532
    %534 = vmatprep.subr.mxu0 0.0
    %v535 = vand.u32 %v76, 4294901760
    %536 = vmatpush1.msra.mxu0 %v535
    %537 = vmatprep.subr.mxu0 0.0
    %538 = vmatpush1.msra.mxu0 0.0
    %539 = vmatprep.subr.mxu0 0.0
    %540 = vmatpush1.msra.mxu0 0.0
    %541 = vmatprep.subr.mxu0 0.0
    %542 = vmatpush1.msra.mxu0 0.0
    %543 = vmatprep.subr.mxu0 0.0
    %544 = vmatpush1.msra.mxu0 0.0
    %545 = vmatprep.subr.mxu0 0.0
    %546 = vmatpush1.msra.mxu0 0.0
    %547 = vmatprep.subr.mxu0 0.0
    %548 = vmatpush1.msra.mxu0 0.0
    %549 = vmatprep.subr.mxu0 0.0
    %550 = vmatpush1.msra.mxu0 0.0
    %551 = vmatprep.subr.mxu0 0.0
    %552 = vmatpush1.msra.mxu0 0.0
    %553 = vmatprep.subr.mxu0 0.0
    %554 = vmatpush1.msra.mxu0 0.0
    %555 = vmatprep.subr.mxu0 0.0
    %556 = vmatpush1.msra.mxu0 0.0
    %557 = vmatprep.subr.mxu0 0.0
    %558 = vmatpush1.msra.mxu0 0.0
    %559 = vmatprep.subr.mxu0 0.0
    %560 = vmatpush1.msra.mxu0 0.0
    %561 = vmatprep.subr.mxu0 0.0
    %562 = vmatpush1.msra.mxu0 0.0
    %563 = vmatprep.subr.mxu0 0.0
    %564 = vmatpush1.msra.mxu0 0.0
    %565 = vmatprep.subr.mxu0 0.0
    %566 = vmatpush1.msra.mxu0 0.0
    %567 = vmatprep.subr.mxu0 0.0
    %568 = vmatpush1.msra.mxu0 0.0
    %569 = vmatprep.subr.mxu0 0.0
    %570 = vmatpush1.msra.mxu0 0.0
    %571 = vmatprep.subr.mxu0 0.0
    %572 = vmatpush1.msra.mxu0 0.0
    %573 = vmatprep.subr.mxu0 0.0
    %574 = vmatpush1.msra.mxu0 0.0
    %575 = vmatprep.subr.mxu0 0.0
    %576 = vmatpush1.msra.mxu0 0.0
    %577 = vmatprep.subr.mxu0 0.0
    %578 = vmatpush1.msra.mxu0 0.0
    %579 = vmatprep.subr.mxu0 0.0
    %580 = vmatpush1.msra.mxu0 0.0
    %581 = vmatprep.subr.mxu0 0.0
    %582 = vmatpush1.msra.mxu0 0.0
    %583 = vmatprep.subr.mxu0 0.0
    %584 = vmatpush1.msra.mxu0 0.0
    %585 = vmatprep.subr.mxu0 0.0
    %586 = vmatpush1.msra.mxu0 0.0
    %587 = vmatprep.subr.mxu0 0.0
    %588 = vmatpush1.msra.mxu0 0.0
    %589 = vmatprep.subr.mxu0 0.0
    %590 = vmatpush1.msra.mxu0 0.0
    %591 = vmatprep.subr.mxu0 0.0
    %592 = vmatpush1.msra.mxu0 0.0
    %593 = vmatprep.mubr.f32.mxu0 0.0
    %v594 = vand.u32 %v69, 4294901760
    %595 = vmatmul.mubr.f32.gmra.mrb[0].mxu0 %v594
    %v596 = vpop.f32.mrb[0].mxu0
    %v597 = vadd.f32 %v516, %v596
    %v598 = vpop.f32.mrb[0].mxu0
    %599 = vmatprep.mubr.f32.mxu0 0.0
    %v600 = vand.u32 %v72, 4294901760
    %601 = vmatmul.mubr.f32.gmra.mrb[0].mxu0 %v600
    %v602 = vpop.f32.mrb[0].mxu0
    %v603 = vadd.f32 %v522, %v602
    %v604 = vpop.f32.mrb[0].mxu0
    %605 = vdwg.mxu0
    %606 = vst.msk [vmem:[#allocation7] sm:$0xff] %vm67, %v597
    %607 = vst.msk [vmem:[#allocation7 + $0x8] sm:$0xff] %vm67, %v603
    %v608 = vld [vmem:[%s0] sm:$0x1]
    %v609 = vld [vmem:[%s0 + $0x1] sm:$0x1]
    %v610 = vlaneseq
    %v611 = vshrl.u32 %v610, 7
    %v612 = vadd.s32 %v611, 8
    %v613 = vadd.s32 %v611, 16
    %v614 = vadd.s32 %v611, 24
    %v615 = vlaneseq
    %v616 = vshrl.u32 %v615, 7
    %v617 = vsub.s32 0, %v616
    %v618 = vrot.slane %v608, %v617
    %vm619 = vcmp.eq.s32.totalorder %v611, %v618
    %vm620 = vcmp.eq.s32.totalorder %v612, %v618
    %vm621 = vcmp.eq.s32.totalorder %v613, %v618
    %vm622 = vcmp.eq.s32.totalorder %v614, %v618
    %v623 = vsel %vm619, 1.0, 0.0
    %v624 = vsel %vm620, 1.0, 0.0
    %v625 = vsel %vm621, 1.0, 0.0
    %v626 = vsel %vm622, 1.0, 0.0
    %v627 = vld [vmem:[#allocation5] sm:$0xff]
    %v628 = vld [vmem:[#allocation5 + $0x8] sm:$0xff]
    %v629 = vld [vmem:[#allocation5 + $0x10] sm:$0xff]
    %v630 = vld [vmem:[#allocation5 + $0x18] sm:$0x7]
    %v632 = vsel %vm67, %v627, 0
    %v635 = vsel %vm67, %v628, 0
    %v638 = vsel %vm67, %v629, 0
    %v641 = vsel %vm67, %v630, 0
    %v644 = vsel %vm74, %v626, 0
    %646 = vmatprep.subr.mxu0 0.0
    %647 = vmatpush1.msra.mxu0 %v623
    %648 = vmatprep.subr.mxu0 0.0
    %649 = vmatpush1.msra.mxu0 %v624
    %650 = vmatprep.subr.mxu0 0.0
    %651 = vmatpush1.msra.mxu0 %v625
    %652 = vmatprep.subr.mxu0 0.0
    %v653 = vand.u32 %v644, 4294901760
    %654 = vmatpush1.msra.mxu0 %v653
    %655 = vmatprep.subr.mxu0 0.0
    %656 = vmatpush1.msra.mxu0 0.0
    %657 = vmatprep.subr.mxu0 0.0
    %658 = vmatpush1.msra.mxu0 0.0
    %659 = vmatprep.subr.mxu0 0.0
    %660 = vmatpush1.msra.mxu0 0.0
    %661 = vmatprep.subr.mxu0 0.0
    %662 = vmatpush1.msra.mxu0 0.0
    %663 = vmatprep.subr.mxu0 0.0
    %664 = vmatpush1.msra.mxu0 0.0
    %665 = vmatprep.subr.mxu0 0.0
    %666 = vmatpush1.msra.mxu0 0.0
    %667 = vmatprep.subr.mxu0 0.0
    %668 = vmatpush1.msra.mxu0 0.0
    %669 = vmatprep.subr.mxu0 0.0
    %670 = vmatpush1.msra.mxu0 0.0
    %671 = vmatprep.subr.mxu0 0.0
    %672 = vmatpush1.msra.mxu0 0.0
    %673 = vmatprep.subr.mxu0 0.0
    %674 = vmatpush1.msra.mxu0 0.0
    %675 = vmatprep.subr.mxu0 0.0
    %676 = vmatpush1.msra.mxu0 0.0
    %677 = vmatprep.subr.mxu0 0.0
    %678 = vmatpush1.msra.mxu0 0.0
    %679 = vmatprep.subr.mxu0 0.0
    %680 = vmatpush1.msra.mxu0 0.0
    %681 = vmatprep.subr.mxu0 0.0
    %682 = vmatpush1.msra.mxu0 0.0
    %683 = vmatprep.subr.mxu0 0.0
    %684 = vmatpush1.msra.mxu0 0.0
    %685 = vmatprep.subr.mxu0 0.0
    %686 = vmatpush1.msra.mxu0 0.0
    %687 = vmatprep.subr.mxu0 0.0
    %688 = vmatpush1.msra.mxu0 0.0
    %689 = vmatprep.subr.mxu0 0.0
    %690 = vmatpush1.msra.mxu0 0.0
    %691 = vmatprep.subr.mxu0 0.0
    %692 = vmatpush1.msra.mxu0 0.0
    %693 = vmatprep.subr.mxu0 0.0
    %694 = vmatpush1.msra.mxu0 0.0
    %695 = vmatprep.subr.mxu0 0.0
    %696 = vmatpush1.msra.mxu0 0.0
    %697 = vmatprep.subr.mxu0 0.0
    %698 = vmatpush1.msra.mxu0 0.0
    %699 = vmatprep.subr.mxu0 0.0
    %700 = vmatpush1.msra.mxu0 0.0
    %701 = vmatprep.subr.mxu0 0.0
    %702 = vmatpush1.msra.mxu0 0.0
    %703 = vmatprep.subr.mxu0 0.0
    %704 = vmatpush1.msra.mxu0 0.0
    %705 = vmatprep.subr.mxu0 0.0
    %706 = vmatpush1.msra.mxu0 0.0
    %707 = vmatprep.subr.mxu0 0.0
    %708 = vmatpush1.msra.mxu0 0.0
    %709 = vmatprep.subr.mxu0 0.0
    %710 = vmatpush1.msra.mxu0 0.0
    %711 = vmatprep.mubr.f32.mxu0 0.0
    %v712 = vand.u32 %v632, 4294901760
    %v713 = vsub.f32 %v632, %v712
    %v714 = vand.u32 %v713, 4294901760
    %v715 = vsub.f32 %v713, %v714
    %v716 = vand.u32 %v715, 4294901760
    %717 = vmatmul.mubr.f32.gmra.mrb[0].mxu0 %v716
    %v718 = vpop.f32.mrb[0].mxu0
    %v719 = vadd.f32 0.0, %v718
    %v720 = vpop.f32.mrb[0].mxu0
    %721 = vmatprep.mubr.f32.mxu0 0.0
    %v722 = vand.u32 %v635, 4294901760
    %v723 = vsub.f32 %v635, %v722
    %v724 = vand.u32 %v723, 4294901760
    %v725 = vsub.f32 %v723, %v724
    %v726 = vand.u32 %v725, 4294901760
    %727 = vmatmul.mubr.f32.gmra.mrb[0].mxu0 %v726
    %v728 = vpop.f32.mrb[0].mxu0
    %v729 = vadd.f32 0.0, %v728
    %v730 = vpop.f32.mrb[0].mxu0
    %731 = vmatprep.mubr.f32.mxu0 0.0
    %v732 = vand.u32 %v638, 4294901760
    %v733 = vsub.f32 %v638, %v732
    %v734 = vand.u32 %v733, 4294901760
    %v735 = vsub.f32 %v733, %v734
    %v736 = vand.u32 %v735, 4294901760
    %737 = vmatmul.mubr.f32.gmra.mrb[0].mxu0 %v736
    %v738 = vpop.f32.mrb[0].mxu0
    %v739 = vadd.f32 0.0, %v738
    %v740 = vpop.f32.mrb[0].mxu0
    %741 = vmatprep.mubr.f32.mxu0 0.0
    %v742 = vand.u32 %v641, 4294901760
    %v743 = vsub.f32 %v641, %v742
    %v744 = vand.u32 %v743, 4294901760
    %v745 = vsub.f32 %v743, %v744
    %v746 = vand.u32 %v745, 4294901760
    %747 = vmatmul.mubr.f32.gmra.mrb[0].mxu0 %v746
    %v748 = vpop.f32.mrb[0].mxu0
    %v749 = vadd.f32 0.0, %v748
    %v750 = vpop.f32.mrb[0].mxu0
    %751 = vdwg.mxu0
    %752 = vmatprep.subr.mxu0 0.0
    %v753 = vsub.f32 %v623, %v623
    %v754 = vand.u32 %v753, 4294901760
    %v755 = vsub.f32 %v753, %v754
    %v756 = vand.u32 %v755, 4294901760
    %757 = vmatpush1.msra.mxu0 %v756
    %758 = vmatprep.subr.mxu0 0.0
    %v759 = vsub.f32 %v624, %v624
    %v760 = vand.u32 %v759, 4294901760
    %v761 = vsub.f32 %v759, %v760
    %v762 = vand.u32 %v761, 4294901760
    %763 = vmatpush1.msra.mxu0 %v762
    %764 = vmatprep.subr.mxu0 0.0
    %v765 = vsub.f32 %v625, %v625
    %v766 = vand.u32 %v765, 4294901760
    %v767 = vsub.f32 %v765, %v766
    %v768 = vand.u32 %v767, 4294901760
    %769 = vmatpush1.msra.mxu0 %v768
    %770 = vmatprep.subr.mxu0 0.0
    %v771 = vand.u32 %v644, 4294901760
    %v772 = vsub.f32 %v644, %v771
    %v773 = vand.u32 %v772, 4294901760
    %v774 = vsub.f32 %v772, %v773
    %v775 = vand.u32 %v774, 4294901760
    %776 = vmatpush1.msra.mxu0 %v775
    %777 = vmatprep.subr.mxu0 0.0
    %778 = vmatpush1.msra.mxu0 0.0
    %779 = vmatprep.subr.mxu0 0.0
    %780 = vmatpush1.msra.mxu0 0.0
    %781 = vmatprep.subr.mxu0 0.0
    %782 = vmatpush1.msra.mxu0 0.0
    %783 = vmatprep.subr.mxu0 0.0
    %784 = vmatpush1.msra.mxu0 0.0
    %785 = vmatprep.subr.mxu0 0.0
    %786 = vmatpush1.msra.mxu0 0.0
    %787 = vmatprep.subr.mxu0 0.0
    %788 = vmatpush1.msra.mxu0 0.0
    %789 = vmatprep.subr.mxu0 0.0
    %790 = vmatpush1.msra.mxu0 0.0
    %791 = vmatprep.subr.mxu0 0.0
    %792 = vmatpush1.msra.mxu0 0.0
    %793 = vmatprep.subr.mxu0 0.0
    %794 = vmatpush1.msra.mxu0 0.0
    %795 = vmatprep.subr.mxu0 0.0
    %796 = vmatpush1.msra.mxu0 0.0
    %797 = vmatprep.subr.mxu0 0.0
    %798 = vmatpush1.msra.mxu0 0.0
    %799 = vmatprep.subr.mxu0 0.0
    %800 = vmatpush1.msra.mxu0 0.0
    %801 = vmatprep.subr.mxu0 0.0
    %802 = vmatpush1.msra.mxu0 0.0
    %803 = vmatprep.subr.mxu0 0.0
    %804 = vmatpush1.msra.mxu0 0.0
    %805 = vmatprep.subr.mxu0 0.0
    %806 = vmatpush1.msra.mxu0 0.0
    %807 = vmatprep.subr.mxu0 0.0
    %808 = vmatpush1.msra.mxu0 0.0
    %809 = vmatprep.subr.mxu0 0.0
    %810 = vmatpush1.msra.mxu0 0.0
    %811 = vmatprep.subr.mxu0 0.0
    %812 = vmatpush1.msra.mxu0 0.0
    %813 = vmatprep.subr.mxu0 0.0
    %814 = vmatpush1.msra.mxu0 0.0
    %815 = vmatprep.subr.mxu0 0.0
    %816 = vmatpush1.msra.mxu0 0.0
    %817 = vmatprep.subr.mxu0 0.0
    %818 = vmatpush1.msra.mxu0 0.0
    %819 = vmatprep.subr.mxu0 0.0
    %820 = vmatpush1.msra.mxu0 0.0
    %821 = vmatprep.subr.mxu0 0.0
    %822 = vmatpush1.msra.mxu0 0.0
    %823 = vmatprep.subr.mxu0 0.0
    %824 = vmatpush1.msra.mxu0 0.0
    %825 = vmatprep.subr.mxu0 0.0
    %826 = vmatpush1.msra.mxu0 0.0
    %827 = vmatprep.subr.mxu0 0.0
    %828 = vmatpush1.msra.mxu0 0.0
    %829 = vmatprep.subr.mxu0 0.0
    %830 = vmatpush1.msra.mxu0 0.0
    %831 = vmatprep.subr.mxu0 0.0
    %832 = vmatpush1.msra.mxu0 0.0
    %833 = vmatprep.mubr.f32.mxu0 0.0
    %v834 = vand.u32 %v632, 4294901760
    %835 = vmatmul.mubr.f32.gmra.mrb[0].mxu0 %v834
    %v836 = vpop.f32.mrb[0].mxu0
    %v837 = vadd.f32 %v719, %v836
    %v838 = vpop.f32.mrb[0].mxu0
    %839 = vmatprep.mubr.f32.mxu0 0.0
    %v840 = vand.u32 %v635, 4294901760
    %841 = vmatmul.mubr.f32.gmra.mrb[0].mxu0 %v840
    %v842 = vpop.f32.mrb[0].mxu0
    %v843 = vadd.f32 %v729, %v842
    %v844 = vpop.f32.mrb[0].mxu0
    %845 = vmatprep.mubr.f32.mxu0 0.0
    %v846 = vand.u32 %v638, 4294901760
    %847 = vmatmul.mubr.f32.gmra.mrb[0].mxu0 %v846
    %v848 = vpop.f32.mrb[0].mxu0
    %v849 = vadd.f32 %v739, %v848
    %v850 = vpop.f32.mrb[0].mxu0
    %851 = vmatprep.mubr.f32.mxu0 0.0
    %v852 = vand.u32 %v641, 4294901760
    %853 = vmatmul.mubr.f32.gmra.mrb[0].mxu0 %v852
    %v854 = vpop.f32.mrb[0].mxu0
    %v855 = vadd.f32 %v749, %v854
    %v856 = vpop.f32.mrb[0].mxu0
    %857 = vdwg.mxu0
    %858 = vmatprep.subr.mxu0 0.0
    %v859 = vsub.f32 %v623, %v623
    %860 = vmatpush1.msra.mxu0 %v859
    %861 = vmatprep.subr.mxu0 0.0
    %v862 = vsub.f32 %v624, %v624
    %863 = vmatpush1.msra.mxu0 %v862
    %864 = vmatprep.subr.mxu0 0.0
    %v865 = vsub.f32 %v625, %v625
    %866 = vmatpush1.msra.mxu0 %v865
    %867 = vmatprep.subr.mxu0 0.0
    %v868 = vand.u32 %v644, 4294901760
    %v869 = vsub.f32 %v644, %v868
    %870 = vmatpush1.msra.mxu0 %v869
    %871 = vmatprep.subr.mxu0 0.0
    %872 = vmatpush1.msra.mxu0 0.0
    %873 = vmatprep.subr.mxu0 0.0
    %874 = vmatpush1.msra.mxu0 0.0
    %875 = vmatprep.subr.mxu0 0.0
    %876 = vmatpush1.msra.mxu0 0.0
    %877 = vmatprep.subr.mxu0 0.0
    %878 = vmatpush1.msra.mxu0 0.0
    %879 = vmatprep.subr.mxu0 0.0
    %880 = vmatpush1.msra.mxu0 0.0
    %881 = vmatprep.subr.mxu0 0.0
    %882 = vmatpush1.msra.mxu0 0.0
    %883 = vmatprep.subr.mxu0 0.0
    %884 = vmatpush1.msra.mxu0 0.0
    %885 = vmatprep.subr.mxu0 0.0
    %886 = vmatpush1.msra.mxu0 0.0
    %887 = vmatprep.subr.mxu0 0.0
    %888 = vmatpush1.msra.mxu0 0.0
    %889 = vmatprep.subr.mxu0 0.0
    %890 = vmatpush1.msra.mxu0 0.0
    %891 = vmatprep.subr.mxu0 0.0
    %892 = vmatpush1.msra.mxu0 0.0
    %893 = vmatprep.subr.mxu0 0.0
    %894 = vmatpush1.msra.mxu0 0.0
    %895 = vmatprep.subr.mxu0 0.0
    %896 = vmatpush1.msra.mxu0 0.0
    %897 = vmatprep.subr.mxu0 0.0
    %898 = vmatpush1.msra.mxu0 0.0
    %899 = vmatprep.subr.mxu0 0.0
    %900 = vmatpush1.msra.mxu0 0.0
    %901 = vmatprep.subr.mxu0 0.0
    %902 = vmatpush1.msra.mxu0 0.0
    %903 = vmatprep.subr.mxu0 0.0
    %904 = vmatpush1.msra.mxu0 0.0
    %905 = vmatprep.subr.mxu0 0.0
    %906 = vmatpush1.msra.mxu0 0.0
    %907 = vmatprep.subr.mxu0 0.0
    %908 = vmatpush1.msra.mxu0 0.0
    %909 = vmatprep.subr.mxu0 0.0
    %910 = vmatpush1.msra.mxu0 0.0
    %911 = vmatprep.subr.mxu0 0.0
    %912 = vmatpush1.msra.mxu0 0.0
    %913 = vmatprep.subr.mxu0 0.0
    %914 = vmatpush1.msra.mxu0 0.0
    %915 = vmatprep.subr.mxu0 0.0
    %916 = vmatpush1.msra.mxu0 0.0
    %917 = vmatprep.subr.mxu0 0.0
    %918 = vmatpush1.msra.mxu0 0.0
    %919 = vmatprep.subr.mxu0 0.0
    %920 = vmatpush1.msra.mxu0 0.0
    %921 = vmatprep.subr.mxu0 0.0
    %922 = vmatpush1.msra.mxu0 0.0
    %923 = vmatprep.subr.mxu0 0.0
    %924 = vmatpush1.msra.mxu0 0.0
    %925 = vmatprep.subr.mxu0 0.0
    %926 = vmatpush1.msra.mxu0 0.0
    %927 = vmatprep.mubr.f32.mxu0 0.0
    %v928 = vand.u32 %v632, 4294901760
    %v929 = vsub.f32 %v632, %v928
    %930 = vmatmul.mubr.f32.gmra.mrb[0].mxu0 %v929
    %v931 = vpop.f32.mrb[0].mxu0
    %v932 = vadd.f32 %v837, %v931
    %v933 = vpop.f32.mrb[0].mxu0
    %934 = vmatprep.mubr.f32.mxu0 0.0
    %v935 = vand.u32 %v635, 4294901760
    %v936 = vsub.f32 %v635, %v935
    %937 = vmatmul.mubr.f32.gmra.mrb[0].mxu0 %v936
    %v938 = vpop.f32.mrb[0].mxu0
    %v939 = vadd.f32 %v843, %v938
    %v940 = vpop.f32.mrb[0].mxu0
    %941 = vmatprep.mubr.f32.mxu0 0.0
    %v942 = vand.u32 %v638, 4294901760
    %v943 = vsub.f32 %v638, %v942
    %944 = vmatmul.mubr.f32.gmra.mrb[0].mxu0 %v943
    %v945 = vpop.f32.mrb[0].mxu0
    %v946 = vadd.f32 %v849, %v945
    %v947 = vpop.f32.mrb[0].mxu0
    %948 = vmatprep.mubr.f32.mxu0 0.0
    %v949 = vand.u32 %v641, 4294901760
    %v950 = vsub.f32 %v641, %v949
    %951 = vmatmul.mubr.f32.gmra.mrb[0].mxu0 %v950
    %v952 = vpop.f32.mrb[0].mxu0
    %v953 = vadd.f32 %v855, %v952
    %v954 = vpop.f32.mrb[0].mxu0
    %955 = vdwg.mxu0
    %956 = vmatprep.subr.mxu0 0.0
    %957 = vmatpush1.msra.mxu0 %v623
    %958 = vmatprep.subr.mxu0 0.0
    %959 = vmatpush1.msra.mxu0 %v624
    %960 = vmatprep.subr.mxu0 0.0
    %961 = vmatpush1.msra.mxu0 %v625
    %962 = vmatprep.subr.mxu0 0.0
    %v963 = vand.u32 %v644, 4294901760
    %964 = vmatpush1.msra.mxu0 %v963
    %965 = vmatprep.subr.mxu0 0.0
    %966 = vmatpush1.msra.mxu0 0.0
    %967 = vmatprep.subr.mxu0 0.0
    %968 = vmatpush1.msra.mxu0 0.0
    %969 = vmatprep.subr.mxu0 0.0
    %970 = vmatpush1.msra.mxu0 0.0
    %971 = vmatprep.subr.mxu0 0.0
    %972 = vmatpush1.msra.mxu0 0.0
    %973 = vmatprep.subr.mxu0 0.0
    %974 = vmatpush1.msra.mxu0 0.0
    %975 = vmatprep.subr.mxu0 0.0
    %976 = vmatpush1.msra.mxu0 0.0
    %977 = vmatprep.subr.mxu0 0.0
    %978 = vmatpush1.msra.mxu0 0.0
    %979 = vmatprep.subr.mxu0 0.0
    %980 = vmatpush1.msra.mxu0 0.0
    %981 = vmatprep.subr.mxu0 0.0
    %982 = vmatpush1.msra.mxu0 0.0
    %983 = vmatprep.subr.mxu0 0.0
    %984 = vmatpush1.msra.mxu0 0.0
    %985 = vmatprep.subr.mxu0 0.0
    %986 = vmatpush1.msra.mxu0 0.0
    %987 = vmatprep.subr.mxu0 0.0
    %988 = vmatpush1.msra.mxu0 0.0
    %989 = vmatprep.subr.mxu0 0.0
    %990 = vmatpush1.msra.mxu0 0.0
    %991 = vmatprep.subr.mxu0 0.0
    %992 = vmatpush1.msra.mxu0 0.0
    %993 = vmatprep.subr.mxu0 0.0
    %994 = vmatpush1.msra.mxu0 0.0
    %995 = vmatprep.subr.mxu0 0.0
    %996 = vmatpush1.msra.mxu0 0.0
    %997 = vmatprep.subr.mxu0 0.0
    %998 = vmatpush1.msra.mxu0 0.0
    %999 = vmatprep.subr.mxu0 0.0
    %1000 = vmatpush1.msra.mxu0 0.0
    %1001 = vmatprep.subr.mxu0 0.0
    %1002 = vmatpush1.msra.mxu0 0.0
    %1003 = vmatprep.subr.mxu0 0.0
    %1004 = vmatpush1.msra.mxu0 0.0
    %1005 = vmatprep.subr.mxu0 0.0
    %1006 = vmatpush1.msra.mxu0 0.0
    %1007 = vmatprep.subr.mxu0 0.0
    %1008 = vmatpush1.msra.mxu0 0.0
    %1009 = vmatprep.subr.mxu0 0.0
    %1010 = vmatpush1.msra.mxu0 0.0
    %1011 = vmatprep.subr.mxu0 0.0
    %1012 = vmatpush1.msra.mxu0 0.0
    %1013 = vmatprep.subr.mxu0 0.0
    %1014 = vmatpush1.msra.mxu0 0.0
    %1015 = vmatprep.subr.mxu0 0.0
    %1016 = vmatpush1.msra.mxu0 0.0
    %1017 = vmatprep.subr.mxu0 0.0
    %1018 = vmatpush1.msra.mxu0 0.0
    %1019 = vmatprep.subr.mxu0 0.0
    %1020 = vmatpush1.msra.mxu0 0.0
    %1021 = vmatprep.mubr.f32.mxu0 0.0
    %v1022 = vand.u32 %v632, 4294901760
    %v1023 = vsub.f32 %v632, %v1022
    %v1024 = vand.u32 %v1023, 4294901760
    %1025 = vmatmul.mubr.f32.gmra.mrb[0].mxu0 %v1024
    %v1026 = vpop.f32.mrb[0].mxu0
    %v1027 = vadd.f32 %v932, %v1026
    %v1028 = vpop.f32.mrb[0].mxu0
    %1029 = vmatprep.mubr.f32.mxu0 0.0
    %v1030 = vand.u32 %v635, 4294901760
    %v1031 = vsub.f32 %v635, %v1030
    %v1032 = vand.u32 %v1031, 4294901760
    %1033 = vmatmul.mubr.f32.gmra.mrb[0].mxu0 %v1032
    %v1034 = vpop.f32.mrb[0].mxu0
    %v1035 = vadd.f32 %v939, %v1034
    %v1036 = vpop.f32.mrb[0].mxu0
    %1037 = vmatprep.mubr.f32.mxu0 0.0
    %v1038 = vand.u32 %v638, 4294901760
    %v1039 = vsub.f32 %v638, %v1038
    %v1040 = vand.u32 %v1039, 4294901760
    %1041 = vmatmul.mubr.f32.gmra.mrb[0].mxu0 %v1040
    %v1042 = vpop.f32.mrb[0].mxu0
    %v1043 = vadd.f32 %v946, %v1042
    %v1044 = vpop.f32.mrb[0].mxu0
    %1045 = vmatprep.mubr.f32.mxu0 0.0
    %v1046 = vand.u32 %v641, 4294901760
    %v1047 = vsub.f32 %v641, %v1046
    %v1048 = vand.u32 %v1047, 4294901760
    %1049 = vmatmul.mubr.f32.gmra.mrb[0].mxu0 %v1048
    %v1050 = vpop.f32.mrb[0].mxu0
    %v1051 = vadd.f32 %v953, %v1050
    %v1052 = vpop.f32.mrb[0].mxu0
    %1053 = vdwg.mxu0
    %1054 = vmatprep.subr.mxu0 0.0
    %v1055 = vsub.f32 %v623, %v623
    %v1056 = vand.u32 %v1055, 4294901760
    %1057 = vmatpush1.msra.mxu0 %v1056
    %1058 = vmatprep.subr.mxu0 0.0
    %v1059 = vsub.f32 %v624, %v624
    %v1060 = vand.u32 %v1059, 4294901760
    %1061 = vmatpush1.msra.mxu0 %v1060
    %1062 = vmatprep.subr.mxu0 0.0
    %v1063 = vsub.f32 %v625, %v625
    %v1064 = vand.u32 %v1063, 4294901760
    %1065 = vmatpush1.msra.mxu0 %v1064
    %1066 = vmatprep.subr.mxu0 0.0
    %v1067 = vand.u32 %v644, 4294901760
    %v1068 = vsub.f32 %v644, %v1067
    %v1069 = vand.u32 %v1068, 4294901760
    %1070 = vmatpush1.msra.mxu0 %v1069
    %1071 = vmatprep.subr.mxu0 0.0
    %1072 = vmatpush1.msra.mxu0 0.0
    %1073 = vmatprep.subr.mxu0 0.0
    %1074 = vmatpush1.msra.mxu0 0.0
    %1075 = vmatprep.subr.mxu0 0.0
    %1076 = vmatpush1.msra.mxu0 0.0
    %1077 = vmatprep.subr.mxu0 0.0
    %1078 = vmatpush1.msra.mxu0 0.0
    %1079 = vmatprep.subr.mxu0 0.0
    %1080 = vmatpush1.msra.mxu0 0.0
    %1081 = vmatprep.subr.mxu0 0.0
    %1082 = vmatpush1.msra.mxu0 0.0
    %1083 = vmatprep.subr.mxu0 0.0
    %1084 = vmatpush1.msra.mxu0 0.0
    %1085 = vmatprep.subr.mxu0 0.0
    %1086 = vmatpush1.msra.mxu0 0.0
    %1087 = vmatprep.subr.mxu0 0.0
    %1088 = vmatpush1.msra.mxu0 0.0
    %1089 = vmatprep.subr.mxu0 0.0
    %1090 = vmatpush1.msra.mxu0 0.0
    %1091 = vmatprep.subr.mxu0 0.0
    %1092 = vmatpush1.msra.mxu0 0.0
    %1093 = vmatprep.subr.mxu0 0.0
    %1094 = vmatpush1.msra.mxu0 0.0
    %1095 = vmatprep.subr.mxu0 0.0
    %1096 = vmatpush1.msra.mxu0 0.0
    %1097 = vmatprep.subr.mxu0 0.0
    %1098 = vmatpush1.msra.mxu0 0.0
    %1099 = vmatprep.subr.mxu0 0.0
    %1100 = vmatpush1.msra.mxu0 0.0
    %1101 = vmatprep.subr.mxu0 0.0
    %1102 = vmatpush1.msra.mxu0 0.0
    %1103 = vmatprep.subr.mxu0 0.0
    %1104 = vmatpush1.msra.mxu0 0.0
    %1105 = vmatprep.subr.mxu0 0.0
    %1106 = vmatpush1.msra.mxu0 0.0
    %1107 = vmatprep.subr.mxu0 0.0
    %1108 = vmatpush1.msra.mxu0 0.0
    %1109 = vmatprep.subr.mxu0 0.0
    %1110 = vmatpush1.msra.mxu0 0.0
    %1111 = vmatprep.subr.mxu0 0.0
    %1112 = vmatpush1.msra.mxu0 0.0
    %1113 = vmatprep.subr.mxu0 0.0
    %1114 = vmatpush1.msra.mxu0 0.0
    %1115 = vmatprep.subr.mxu0 0.0
    %1116 = vmatpush1.msra.mxu0 0.0
    %1117 = vmatprep.subr.mxu0 0.0
    %1118 = vmatpush1.msra.mxu0 0.0
    %1119 = vmatprep.subr.mxu0 0.0
    %1120 = vmatpush1.msra.mxu0 0.0
    %1121 = vmatprep.subr.mxu0 0.0
    %1122 = vmatpush1.msra.mxu0 0.0
    %1123 = vmatprep.subr.mxu0 0.0
    %1124 = vmatpush1.msra.mxu0 0.0
    %1125 = vmatprep.subr.mxu0 0.0
    %1126 = vmatpush1.msra.mxu0 0.0
    %1127 = vmatprep.mubr.f32.mxu0 0.0
    %v1128 = vand.u32 %v632, 4294901760
    %1129 = vmatmul.mubr.f32.gmra.mrb[0].mxu0 %v1128
    %v1130 = vpop.f32.mrb[0].mxu0
    %v1131 = vadd.f32 %v1027, %v1130
    %v1132 = vpop.f32.mrb[0].mxu0
    %1133 = vmatprep.mubr.f32.mxu0 0.0
    %v1134 = vand.u32 %v635, 4294901760
    %1135 = vmatmul.mubr.f32.gmra.mrb[0].mxu0 %v1134
    %v1136 = vpop.f32.mrb[0].mxu0
    %v1137 = vadd.f32 %v1035, %v1136
    %v1138 = vpop.f32.mrb[0].mxu0
    %1139 = vmatprep.mubr.f32.mxu0 0.0
    %v1140 = vand.u32 %v638, 4294901760
    %1141 = vmatmul.mubr.f32.gmra.mrb[0].mxu0 %v1140
    %v1142 = vpop.f32.mrb[0].mxu0
    %v1143 = vadd.f32 %v1043, %v1142
    %v1144 = vpop.f32.mrb[0].mxu0
    %1145 = vmatprep.mubr.f32.mxu0 0.0
    %v1146 = vand.u32 %v641, 4294901760
    %1147 = vmatmul.mubr.f32.gmra.mrb[0].mxu0 %v1146
    %v1148 = vpop.f32.mrb[0].mxu0
    %v1149 = vadd.f32 %v1051, %v1148
    %v1150 = vpop.f32.mrb[0].mxu0
    %1151 = vdwg.mxu0
    %1152 = vmatprep.subr.mxu0 0.0
    %1153 = vmatpush1.msra.mxu0 %v623
    %1154 = vmatprep.subr.mxu0 0.0
    %1155 = vmatpush1.msra.mxu0 %v624
    %1156 = vmatprep.subr.mxu0 0.0
    %1157 = vmatpush1.msra.mxu0 %v625
    %1158 = vmatprep.subr.mxu0 0.0
    %v1159 = vand.u32 %v644, 4294901760
    %1160 = vmatpush1.msra.mxu0 %v1159
    %1161 = vmatprep.subr.mxu0 0.0
    %1162 = vmatpush1.msra.mxu0 0.0
    %1163 = vmatprep.subr.mxu0 0.0
    %1164 = vmatpush1.msra.mxu0 0.0
    %1165 = vmatprep.subr.mxu0 0.0
    %1166 = vmatpush1.msra.mxu0 0.0
    %1167 = vmatprep.subr.mxu0 0.0
    %1168 = vmatpush1.msra.mxu0 0.0
    %1169 = vmatprep.subr.mxu0 0.0
    %1170 = vmatpush1.msra.mxu0 0.0
    %1171 = vmatprep.subr.mxu0 0.0
    %1172 = vmatpush1.msra.mxu0 0.0
    %1173 = vmatprep.subr.mxu0 0.0
    %1174 = vmatpush1.msra.mxu0 0.0
    %1175 = vmatprep.subr.mxu0 0.0
    %1176 = vmatpush1.msra.mxu0 0.0
    %1177 = vmatprep.subr.mxu0 0.0
    %1178 = vmatpush1.msra.mxu0 0.0
    %1179 = vmatprep.subr.mxu0 0.0
    %1180 = vmatpush1.msra.mxu0 0.0
    %1181 = vmatprep.subr.mxu0 0.0
    %1182 = vmatpush1.msra.mxu0 0.0
    %1183 = vmatprep.subr.mxu0 0.0
    %1184 = vmatpush1.msra.mxu0 0.0
    %1185 = vmatprep.subr.mxu0 0.0
    %1186 = vmatpush1.msra.mxu0 0.0
    %1187 = vmatprep.subr.mxu0 0.0
    %1188 = vmatpush1.msra.mxu0 0.0
    %1189 = vmatprep.subr.mxu0 0.0
    %1190 = vmatpush1.msra.mxu0 0.0
    %1191 = vmatprep.subr.mxu0 0.0
    %1192 = vmatpush1.msra.mxu0 0.0
    %1193 = vmatprep.subr.mxu0 0.0
    %1194 = vmatpush1.msra.mxu0 0.0
    %1195 = vmatprep.subr.mxu0 0.0
    %1196 = vmatpush1.msra.mxu0 0.0
    %1197 = vmatprep.subr.mxu0 0.0
    %1198 = vmatpush1.msra.mxu0 0.0
    %1199 = vmatprep.subr.mxu0 0.0
    %1200 = vmatpush1.msra.mxu0 0.0
    %1201 = vmatprep.subr.mxu0 0.0
    %1202 = vmatpush1.msra.mxu0 0.0
    %1203 = vmatprep.subr.mxu0 0.0
    %1204 = vmatpush1.msra.mxu0 0.0
    %1205 = vmatprep.subr.mxu0 0.0
    %1206 = vmatpush1.msra.mxu0 0.0
    %1207 = vmatprep.subr.mxu0 0.0
    %1208 = vmatpush1.msra.mxu0 0.0
    %1209 = vmatprep.subr.mxu0 0.0
    %1210 = vmatpush1.msra.mxu0 0.0
    %1211 = vmatprep.subr.mxu0 0.0
    %1212 = vmatpush1.msra.mxu0 0.0
    %1213 = vmatprep.subr.mxu0 0.0
    %1214 = vmatpush1.msra.mxu0 0.0
    %1215 = vmatprep.subr.mxu0 0.0
    %1216 = vmatpush1.msra.mxu0 0.0
    %1217 = vmatprep.mubr.f32.mxu0 0.0
    %v1218 = vand.u32 %v632, 4294901760
    %1219 = vmatmul.mubr.f32.gmra.mrb[0].mxu0 %v1218
    %v1220 = vpop.f32.mrb[0].mxu0
    %v1221 = vadd.f32 %v1131, %v1220
    %v1222 = vpop.f32.mrb[0].mxu0
    %1223 = vmatprep.mubr.f32.mxu0 0.0
    %v1224 = vand.u32 %v635, 4294901760
    %1225 = vmatmul.mubr.f32.gmra.mrb[0].mxu0 %v1224
    %v1226 = vpop.f32.mrb[0].mxu0
    %v1227 = vadd.f32 %v1137, %v1226
    %v1228 = vpop.f32.mrb[0].mxu0
    %1229 = vmatprep.mubr.f32.mxu0 0.0
    %v1230 = vand.u32 %v638, 4294901760
    %1231 = vmatmul.mubr.f32.gmra.mrb[0].mxu0 %v1230
    %v1232 = vpop.f32.mrb[0].mxu0
    %v1233 = vadd.f32 %v1143, %v1232
    %v1234 = vpop.f32.mrb[0].mxu0
    %1235 = vmatprep.mubr.f32.mxu0 0.0
    %v1236 = vand.u32 %v641, 4294901760
    %1237 = vmatmul.mubr.f32.gmra.mrb[0].mxu0 %v1236
    %v1238 = vpop.f32.mrb[0].mxu0
    %v1239 = vadd.f32 %v1149, %v1238
    %v1240 = vpop.f32.mrb[0].mxu0
    %1241 = vdwg.mxu0
    %vm1242 = vcmask 130048
    %v1243 = vsel %vm1242, %v1221, -inf
    %v1244 = vsel %vm1242, %v1227, -inf
    %v1245 = vsel %vm1242, %v1233, -inf
    %vm1246 = vcmask 124928
    %v1247 = vsel %vm1246, %v1239, -inf
    %v1248 = vmax.f32 %v1243, %v1244
    %v1249 = vmax.f32 %v1245, %v1247
    %v1250 = vmax.f32 %v1248, %v1249
    %v1251 = vrot.slane %v1250, 4
    %v1252 = vmax.f32 %v1250, %v1251
    %v1253 = vrot.slane %v1252, 2
    %v1254 = vmax.f32 %v1252, %v1253
    %v1255 = vrot.slane %v1254, 1
    %v1256 = vmax.f32 %v1254, %v1255
    %v1257 = vsub.f32 %v1221, %v1256
    %v1258 = vsub.f32 %v1227, %v1256
    %v1259 = vsub.f32 %v1233, %v1256
    %v1260 = vsub.f32 %v1239, %v1256
    %v1261 = vmul.f32 %v1257, 1.442695
    %v1262 = vpow.pop %v1261
    %v1263 = vmul.f32 %v1258, 1.442695
    %v1264 = vpow.pop %v1263
    %v1265 = vmul.f32 %v1259, 1.442695
    %v1266 = vpow.pop %v1265
    %v1267 = vmul.f32 %v1260, 1.442695
    %v1268 = vpow.pop %v1267
    %v1269 = vsel %vm1242, %v1262, 0.0
    %v1270 = vsel %vm1242, %v1264, 0.0
    %v1271 = vadd.f32 %v1269, %v1270
    %v1272 = vsel %vm1242, %v1266, 0.0
    %v1273 = vadd.f32 %v1271, %v1272
    %v1274 = vsel %vm1246, %v1268, 0.0
    %v1275 = vadd.f32 %v1273, %v1274
    %v1276 = vrot.slane %v1275, 4
    %v1277 = vadd.f32 %v1275, %v1276
    %v1278 = vrot.slane %v1277, 2
    %v1279 = vadd.f32 %v1277, %v1278
    %v1280 = vrot.slane %v1279, 1
    %v1281 = vadd.f32 %v1279, %v1280
    %v1282 = vlaneseq
    %v1283 = vshrl.u32 %v1282, 7
    %v1284 = vsub.s32 0, %v1283
    %v1285 = vrot.slane %v609, %v1284
    %vm1286 = vcmp.eq.s32.totalorder %v611, %v1285
    %vm1287 = vcmp.eq.s32.totalorder %v612, %v1285
    %vm1288 = vcmp.eq.s32.totalorder %v613, %v1285
    %vm1289 = vcmp.eq.s32.totalorder %v614, %v1285
    %v1290 = vsel %vm1286, %v1221, 0.0
    %v1291 = vsel %vm1287, %v1227, 0.0
    %v1292 = vsel %vm1288, %v1233, 0.0
    %v1293 = vsel %vm1289, %v1239, 0.0
    %v1294 = vsel %vm1242, %v1290, 0.0
    %v1295 = vsel %vm1242, %v1291, 0.0
    %v1296 = vadd.f32 %v1294, %v1295
    %v1297 = vsel %vm1242, %v1292, 0.0
    %v1298 = vadd.f32 %v1296, %v1297
    %v1299 = vsel %vm1246, %v1293, 0.0
    %v1300 = vadd.f32 %v1298, %v1299
    %v1301 = vrot.slane %v1300, 4
    %v1302 = vadd.f32 %v1300, %v1301
    %v1303 = vrot.slane %v1302, 2
    %v1304 = vadd.f32 %v1302, %v1303
    %v1305 = vrot.slane %v1304, 1
    %v1306 = vadd.f32 %v1304, %v1305
    %vm1307 = vcmp.ne.s32.totalorder %v609, 4294967295
    %v1308 = vsel %vm1307, 1, 0
    %v1309 = vcvt.s32.f32 %v1308
    %v1310 = vsub.f32 %v1306, %v1256
    %v1311 = vlog2.pop %v1281
    %v1312 = vmul.f32 %v1311, 0.6931472
    %v1313 = vsub.f32 %v1310, %v1312
    %v1314 = vmul.f32 %v1313, %v1309
    %vm1315 = vcmask 122880
    %v1316 = vsel %vm1315, %v1314, 0.0
    %1317 = vadd.xlane.f32.xlu0 %v1316
    %v1318 = vpop.xlane.xlu0 %1317
    %v1319 = vsub.f32 0.0, %v1318
    %v1320 = vsel %vm1315, %v1309, 0.0
    %1321 = vadd.xlane.f32.xlu0 %v1320
    %v1322 = vpop.xlane.xlu0 %1321
    %vm1323 = vcmp.lt.s32.totalorder %v611, 4
    %v1324 = vlaneseq
    %v1325 = vshrl.u32 %v1324, 7
    %v1326 = vsub.s32 0, %v1325
    %v1327 = vrot.slane %v1319, %v1326
    %v1328 = vlaneseq
    %v1329 = vshrl.u32 %v1328, 7
    %v1330 = vsub.s32 0, %v1329
    %v1331 = vrot.slane %v1322, %v1330
    %v1332 = vsel %vm1323, %v1327, %v1331
    %1333 = vst [vmem:[#allocation8] sm:$0xff] %v1332
    // Predicated region
    $region26: #{tpu_custom_call.1} parent=1 // pred_check
      _
    $region27: #{tpu_custom_call.1} parent=1 // pred_check_branch
      %1335 = sbr.rel (0) target = $region29
    $region28: #{tpu_custom_call.1} parent=1 // pred_region
      %s1337 = ssub.s32 256, 256
      %1338 = vsyncadd [#allocation4], %s1337
      %s1339 = sshll.u32 [#allocation7], 4
      %s1340 = int_to_ptr.vmem [resolvable:$true] %s1339
      %1345 = dma.vmem_to_hbm [thread:$0]  %s1340, 256, %s4, [#allocation4], 128, 128, 8
    $region29: #{tpu_custom_call.1} parent=1 // pred_fallthru
      _
    // Predicated region
    $region30: #{tpu_custom_call.1} parent=1 // pred_check
      _
    $region31: #{tpu_custom_call.1} parent=1 // pred_check_branch
      %1347 = sbr.rel (0) target = $region33
    $region32: #{tpu_custom_call.1} parent=1 // pred_region
      %s1349 = ssub.s32 128, 128
      %1350 = vsyncadd [#allocation9], %s1349
      %s1352 = sshll.u32 [#allocation8], 4
      %s1353 = int_to_ptr.vmem [resolvable:$true] %s1352
      %1355 = dma.vmem_to_hbm [thread:$0]  %s1353, 128, %s5, [#allocation9]
    $region33: #{tpu_custom_call.1} parent=1 // pred_fallthru
      _
    // Predicated region
    $region34: #{tpu_custom_call.1} parent=1 // pred_check
      _
    $region35: #{tpu_custom_call.1} parent=1 // pred_check_branch
      %1357 = sbr.rel (0) target = $region37
    $region36: #{tpu_custom_call.1} parent=1 // pred_region
      %1358 = dma.done [#allocation4], 256
    $region37: #{tpu_custom_call.1} parent=1 // pred_fallthru
      _
    // Predicated region
    $region38: #{tpu_custom_call.1} parent=1 // pred_check
      _
    $region39: #{tpu_custom_call.1} parent=1 // pred_check_branch
      %1360 = sbr.rel (0) target = $region41
    $region40: #{tpu_custom_call.1} parent=1 // pred_region
      %1361 = dma.done [#allocation9], 128
    $region41: #{tpu_custom_call.1} parent=1 // pred_fallthru
      _
    %1362 = vsyncpa [#allocation3], 1
    %1363 = vsyncpa [#allocation6], 1
    %1364 = vsyncpa [#allocation4], 1
    %1365 = vsyncpa [#allocation9], 1

</llo_original>
